<compile_context>
chip_gen: v6e
topology: v6e:2x2x1
jax: 0.10.0
libtpu: 0.0.40
codegen_flags: <defaults>
</compile_context>

<pallas_src>
import jax
import jax.numpy as jnp
from jax.experimental import pallas as pl
from jax.experimental.pallas import tpu as pltpu


def _round_up(n: int, m: int) -> int:
    return ((n + m - 1) // m) * m


def _choose_tile(padded_b: int, block_b: int) -> int:
    """Largest multiple of 128 that divides padded_b and is <= block_b.

    padded_b and block_b are both multiples of 128.  If the resulting tile
    covers the whole (large) batch, split it in two so a 2-TC chip (v7x) can
    shard the parallel grid axis across both cores.
    """
    k = padded_b // 128
    cap = max(block_b // 128, 1)
    best = 1
    d = 1
    while d * d <= k:
        if k % d == 0:
            for c in (d, k // d):
                if c <= cap and c > best:
                    best = c
        d += 1
    tb = best * 128
    # v7x: prefer >= 2 grid tiles when each half still has >= 1024 rows.
    if tb == padded_b and padded_b >= 2048 and (padded_b // 2) % 128 == 0:
        tb = padded_b // 2
    return tb


def _critic_kernel(x_ref, w1_ref, b1_ref, w2_ref, b2_ref, out_ref):
    # x_ref : (TB, S)     input dtype (f32 in HBM; cast to MXU dtype in-kernel)
    # w1_ref: (S, H)      bf16/f32  -- resident
    # b1_ref: (1, H)      f32       -- resident
    # w2_ref: (1, H)      f32       -- resident (value-head weight row)
    # b2_ref: (1, 1)      f32       -- SMEM scalar
    # out_ref: (1, 1, TB) f32       -- lane-dense values for this batch tile
    xv = x_ref[...].astype(w1_ref.dtype)          # in-kernel cast (free: DMA-bound)
    h = jnp.dot(xv, w1_ref[...], preferred_element_type=jnp.float32)
    h = jnp.maximum(h + b1_ref[...], 0.0)
    # Value head as VPU multiply + cross-lane reduce (avoids an N=1 MXU matmul).
    v = jnp.sum(h * w2_ref[...], axis=-1) + b2_ref[0, 0]          # (TB,)
    out_ref[...] = v.reshape(out_ref.shape).astype(out_ref.dtype)


def critic_forward(x, w1, b1, w2, b2, *, block_b=4096, use_bf16=True):
    """Critic forward pass.

    x : (B, state_space)
    w1: (state_space, hidden)   b1: (1, hidden) or (hidden,)
    w2: (1, hidden) / (hidden,) / (hidden, 1)   b2: scalar-shaped
    Returns (B, 1) float32 values.
    """
    B, S = x.shape
    H = w1.shape[1]

    b1 = jnp.asarray(b1, jnp.float32).reshape(1, H)
    w2_row = jnp.asarray(w2, jnp.float32).reshape(1, H)
    b2 = jnp.asarray(b2, jnp.float32).reshape(1, 1)

    # Only the tiny, resident w1 is cast in the wrapper; x stays in HBM
    # in its original dtype and is cast inside the kernel.
    w1 = w1.astype(jnp.bfloat16 if use_bf16 else jnp.float32)

    # block_b must be a multiple of 128 (lane-dense output, (8,128) tiling).
    block_b = max(128, _round_up(int(block_b), 128))

    # Pad the batch only to a multiple of 128 (at most 127 extra rows),
    # NOT to a multiple of the tile size.
    padded_b = _round_up(max(B, 1), 128)
    if padded_b != B:
        x = jnp.pad(x, ((0, padded_b - B), (0, 0)))

    tb = _choose_tile(padded_b, block_b)
    n_tiles = padded_b // tb

    out = pl.pallas_call(
        _critic_kernel,
        out_shape=jax.ShapeDtypeStruct((n_tiles, 1, tb), jnp.float32),
        grid=(n_tiles,),
        in_specs=[
            pl.BlockSpec((tb, S), lambda i: (i, 0)),        # x: stream over batch
            pl.BlockSpec((S, H), lambda i: (0, 0)),         # w1: resident
            pl.BlockSpec((1, H), lambda i: (0, 0)),         # b1: resident
            pl.BlockSpec((1, H), lambda i: (0, 0)),         # w2 row: resident
            pl.BlockSpec(memory_space=pltpu.MemorySpace.SMEM),  # b2: SMEM scalar
        ],
        out_specs=pl.BlockSpec((1, 1, tb), lambda i: (i, 0, 0)),
        compiler_params=pltpu.CompilerParams(
            dimension_semantics=("parallel",)),
    )(x, w1, b1, w2_row, b2)

    # (n_tiles, 1, tb) -> (padded_b, 1) -> (B, 1)
    return out.reshape(padded_b, 1)[:B]


def init_critic_params(key, state_space, hidden_size=64):
    """Deterministic init mirroring nn.Linear's default U(-1/sqrt(fan_in), +)."""
    k1, k2, k3, k4 = jax.random.split(key, 4)
    bound1 = 1.0 / jnp.sqrt(state_space)
    bound2 = 1.0 / jnp.sqrt(hidden_size)
    w1 = jax.random.uniform(k1, (state_space, hidden_size), jnp.float32,
                            -bound1, bound1)
    b1 = jax.random.uniform(k2, (1, hidden_size), jnp.float32, -bound1, bound1)
    w2 = jax.random.uniform(k3, (1, hidden_size), jnp.float32, -bound2, bound2)
    b2 = jax.random.uniform(k4, (1, 1), jnp.float32, -bound2, bound2)
    return w1, b1, w2, b2


def _reference(x, w1, b1, w2, b2, hidden_size):
    # Same math as the PyTorch forward, with matmul inputs rounded to bf16
    # exactly as the kernel sees them; accumulation stays in f32.
    xb = x.astype(jnp.bfloat16).astype(jnp.float32)
    w1b = w1.astype(jnp.bfloat16).astype(jnp.float32)
    h = jnp.maximum(xb @ w1b + b1, 0.0)
    return h @ w2.reshape(hidden_size, 1) + b2


if __name__ == "__main__":
    key = jax.random.PRNGKey(0)
    k_x, k_x2, k_p = jax.random.split(key, 3)

    state_space = 32
    hidden_size = 64
    w1, b1, w2, b2 = init_critic_params(k_p, state_space, hidden_size)

    # Small batch (exercises the pad-to-128 path, single tile).
    batch = 8
    x = jax.random.normal(k_x, (batch, state_space), jnp.float32)
    value = jax.block_until_ready(critic_forward(x, w1, b1, w2, b2))
    ref = _reference(x, w1, b1, w2, b2, hidden_size)
    assert value.shape == (batch, 1), value.shape
    assert jnp.allclose(value, ref, atol=2e-3, rtol=2e-3), jnp.abs(value - ref).max()

    # Non-multiple-of-128 batch (pads to 384; tb chosen as a divisor of 384).
    batch2 = 300
    x2 = jax.random.normal(k_x2, (batch2, state_space), jnp.float32)
    value2 = jax.block_until_ready(critic_forward(x2, w1, b1, w2, b2))
    ref2 = _reference(x2, w1, b1, w2, b2, hidden_size)
    assert value2.shape == (batch2, 1), value2.shape
    assert jnp.allclose(value2, ref2, atol=2e-3, rtol=2e-3), jnp.abs(value2 - ref2).max()

    print("KERNEL_OK")
</pallas_src>

<mosaic_0001>
module attributes {stable_mosaic.version = 11 : i64} {
  func.func @_critic_kernel(%arg0: i32, %arg1: memref<128x32xf32, #tpu.memory_space<vmem>>, %arg2: memref<32x64xbf16, #tpu.memory_space<vmem>>, %arg3: memref<1x64xf32, #tpu.memory_space<vmem>>, %arg4: memref<1x64xf32, #tpu.memory_space<vmem>>, %arg5: memref<1x1xf32, #tpu.memory_space<smem>>, %arg6: memref<1x1x128xf32, #tpu.memory_space<vmem>>) attributes {dimension_semantics = [#tpu.dimension_semantics<parallel>], iteration_bounds = array<i64: 1>, scalar_prefetch = 0 : i64, scratch_operands = 0 : i64, tpu.core_type = #tpu.core_type<tc>, window_params = [{transform_indices = @transform_0, window_bounds = array<i64: 128, 32>}, {pipeline_mode = #tpu.pipeline_mode<synchronous>, transform_indices = @transform_1, window_bounds = array<i64: 32, 64>}, {pipeline_mode = #tpu.pipeline_mode<synchronous>, transform_indices = @transform_2, window_bounds = array<i64: 1, 64>}, {pipeline_mode = #tpu.pipeline_mode<synchronous>, transform_indices = @transform_3, window_bounds = array<i64: 1, 64>}, {transform_indices = @transform_4, window_bounds = array<i64: 1, 1>}, {transform_indices = @transform_5, window_bounds = array<i64: 1, 1, 128>}]} {
    %c0 = arith.constant 0 : index
    %c0_0 = arith.constant 0 : index
    %0 = vector.load %arg1[%c0, %c0_0] : memref<128x32xf32, #tpu.memory_space<vmem>>, vector<128x32xf32>
    %1 = arith.truncf %0 : vector<128x32xf32> to vector<128x32xbf16>
    %c0_1 = arith.constant 0 : index
    %c0_2 = arith.constant 0 : index
    %2 = vector.load %arg2[%c0_1, %c0_2] : memref<32x64xbf16, #tpu.memory_space<vmem>>, vector<32x64xbf16>
    %cst = arith.constant dense<0.000000e+00> : vector<128x64xf32>
    %3 = tpu.matmul %1, %2, %cst {dimension_numbers = #tpu.dot_dimension_numbers<[1], [0], [0], [1], [0, 0, 1, 1], [], []>} : vector<128x32xbf16>, vector<32x64xbf16>, vector<128x64xf32> -> vector<128x64xf32>
    %c0_3 = arith.constant 0 : index
    %c0_4 = arith.constant 0 : index
    %4 = vector.load %arg3[%c0_3, %c0_4] : memref<1x64xf32, #tpu.memory_space<vmem>>, vector<1x64xf32>
    %5 = vector.broadcast %4 : vector<1x64xf32> to vector<128x64xf32>
    %6 = arith.addf %3, %5 : vector<128x64xf32>
    %cst_5 = arith.constant 0.000000e+00 : f32
    %7 = vector.broadcast %cst_5 : f32 to vector<128x64xf32>
    %8 = arith.maximumf %6, %7 : vector<128x64xf32>
    %c0_6 = arith.constant 0 : index
    %c0_7 = arith.constant 0 : index
    %9 = vector.load %arg4[%c0_6, %c0_7] : memref<1x64xf32, #tpu.memory_space<vmem>>, vector<1x64xf32>
    %10 = vector.broadcast %9 : vector<1x64xf32> to vector<128x64xf32>
    %11 = arith.mulf %8, %10 : vector<128x64xf32>
    %cst_8 = arith.constant dense<0.000000e+00> : vector<128xf32>
    %12 = vector.multi_reduction <add>, %11, %cst_8 [1] : vector<128x64xf32> to vector<128xf32>
    %c0_9 = arith.constant 0 : index
    %c0_10 = arith.constant 0 : index
    %13 = memref.load %arg5[%c0_9, %c0_10] : memref<1x1xf32, #tpu.memory_space<smem>>
    %14 = vector.broadcast %13 : f32 to vector<128xf32>
    %15 = arith.addf %12, %14 : vector<128xf32>
    %16 = vector.shape_cast %15 : vector<128xf32> to vector<1x1x128xf32>
    %c0_11 = arith.constant 0 : index
    %c0_12 = arith.constant 0 : index
    %c0_13 = arith.constant 0 : index
    %17 = vector.load %arg6[%c0_11, %c0_12, %c0_13] : memref<1x1x128xf32, #tpu.memory_space<vmem>>, vector<1x1x128xf32>
    tpu.vector_store %arg6[%c0_11, %c0_12, %c0_13], %16 {strides = array<i32>} : memref<1x1x128xf32, #tpu.memory_space<vmem>>, vector<1x1x128xf32>,
    return
  }
  func.func @transform_0(%arg0: i32) -> (i32, i32) {
    %c0_i32 = arith.constant 0 : i32
    %c0_i32_0 = arith.constant 0 : i32
    return %arg0, %c0_i32 : i32, i32
  }
  func.func @transform_1(%arg0: i32) -> (i32, i32) {
    %c0_i32 = arith.constant 0 : i32
    %c0_i32_0 = arith.constant 0 : i32
    %c0_i32_1 = arith.constant 0 : i32
    return %c0_i32, %c0_i32_0 : i32, i32
  }
  func.func @transform_2(%arg0: i32) -> (i32, i32) {
    %c0_i32 = arith.constant 0 : i32
    %c0_i32_0 = arith.constant 0 : i32
    %c0_i32_1 = arith.constant 0 : i32
    return %c0_i32, %c0_i32_0 : i32, i32
  }
  func.func @transform_3(%arg0: i32) -> (i32, i32) {
    %c0_i32 = arith.constant 0 : i32
    %c0_i32_0 = arith.constant 0 : i32
    %c0_i32_1 = arith.constant 0 : i32
    return %c0_i32, %c0_i32_0 : i32, i32
  }
  func.func @transform_4(%arg0: i32) -> (i32, i32) {
    %c0_i32 = arith.constant 0 : i32
    %c0_i32_0 = arith.constant 0 : i32
    %c0_i32_1 = arith.constant 0 : i32
    return %c0_i32, %c0_i32_0 : i32, i32
  }
  func.func @transform_5(%arg0: i32) -> (i32, i32, i32) {
    %c0_i32 = arith.constant 0 : i32
    %c0_i32_0 = arith.constant 0 : i32
    %c0_i32_1 = arith.constant 0 : i32
    return %arg0, %c0_i32, %c0_i32_0 : i32, i32, i32
  }
}

</mosaic_0001>

<llo_original>
// kernel: tpu_custom_call.1
$region0: #{tpu_custom_call.1}
  #allocation0 [shape = 'u32[]', space=smem, size = 0x4, offset = 0x4, fixed_abs, tag = 'smem constant byte address 0x4 - core index']
  #allocation1 [shape = 'u32[144,128]{1,0:T(1,128)}', space=vmem, size = 0x12000, scoped, tag = 'internal scratch']
  #allocation2 [shape = 'f32[1,1]{1,0:T(1,128)S(6)}', space=smem, size = 0x200, scoped, tag = 'scoped memory for tpu_custom_call.1']
  %s0 = inlined_call_operand.vmem [shape: f32[128,32], index: 0, kind: input, shape index: {}]
  %s1 = inlined_call_operand.vmem [shape: bf16[32,64], index: 1, kind: input, shape index: {}]
  %s2 = inlined_call_operand.vmem [shape: f32[1,64], index: 2, kind: input, shape index: {}]
  %s3 = inlined_call_operand.vmem [shape: f32[1,64], index: 3, kind: input, shape index: {}]
  %s4 = inlined_call_operand.<no memory space> [shape: f32[1,1], index: 4, kind: input, shape index: {}]
  %s5 = inlined_call_operand.hbm [shape: f32[1,1,128], index: 5, kind: output, shape index: {}]
  %s6 = sld [smem:[#allocation0]]
  $region30: #{tpu_custom_call.1} parent=0
    _
  %s8 = ssub.s32 1, %s6
  %s9 = scalar_select 0, %s8, %s6
  %10 = sst [smem:[#allocation2]] %s4
  $region1: #{tpu_custom_call.1} parent=0
    #allocation3 [shape = 'u8[512]{0}', space=vmem, size = 0x400, scoped, tag = 'output window, operand 0, single buffered']
    #allocation4 [shape = 's32[1]{0}', space=sflag, size = 0x4, scoped, tag = 'scoped memory for tpu_custom_call.1']
    %11 = vsyncpa [#allocation4], 0
    // Predicated region
    $region2: #{tpu_custom_call.1} parent=1 // pred_check
      _
    $region3: #{tpu_custom_call.1} parent=1 // pred_check_branch
      %13 = sbr.rel (0) target = $region5
    $region4: #{tpu_custom_call.1} parent=1 // pred_region
      _
    $region5: #{tpu_custom_call.1} parent=1 // pred_fallthru
      _
    // Predicated region
    $region6: #{tpu_custom_call.1} parent=1 // pred_check
      _
    $region7: #{tpu_custom_call.1} parent=1 // pred_check_branch
      %15 = sbr.rel (0) target = $region9
    $region8: #{tpu_custom_call.1} parent=1 // pred_region
      _
    $region9: #{tpu_custom_call.1} parent=1 // pred_fallthru
      _
    // Predicated region
    $region10: #{tpu_custom_call.1} parent=1 // pred_check
      _
    $region11: #{tpu_custom_call.1} parent=1 // pred_check_branch
      %17 = sbr.rel (0) target = $region13
    $region12: #{tpu_custom_call.1} parent=1 // pred_region
      _
    $region13: #{tpu_custom_call.1} parent=1 // pred_fallthru
      _
    // Predicated region
    $region14: #{tpu_custom_call.1} parent=1 // pred_check
      _
    $region15: #{tpu_custom_call.1} parent=1 // pred_check_branch
      %19 = sbr.rel (0) target = $region17
    $region16: #{tpu_custom_call.1} parent=1 // pred_region
      _
    $region17: #{tpu_custom_call.1} parent=1 // pred_fallthru
      _
    // Predicated region
    $region18: #{tpu_custom_call.1} parent=1 // pred_check
      _
    $region19: #{tpu_custom_call.1} parent=1 // pred_check_branch
      %21 = sbr.rel (0) target = $region21
    $region20: #{tpu_custom_call.1} parent=1 // pred_region
      _
    $region21: #{tpu_custom_call.1} parent=1 // pred_fallthru
      _
    %v23 = vld [vmem:[%s0] sm:$0xff]
    %v24 = vld [vmem:[%s0 + $0x8] sm:$0xff]
    %v25 = vld [vmem:[%s0 + $0x10] sm:$0xff]
    %v26 = vld [vmem:[%s0 + $0x18] sm:$0xff]
    %v27 = vld [vmem:[%s0 + $0x20] sm:$0xff]
    %v28 = vld [vmem:[%s0 + $0x28] sm:$0xff]
    %v29 = vld [vmem:[%s0 + $0x30] sm:$0xff]
    %v30 = vld [vmem:[%s0 + $0x38] sm:$0xff]
    %v31 = vld [vmem:[%s0 + $0x40] sm:$0xff]
    %v32 = vld [vmem:[%s0 + $0x48] sm:$0xff]
    %v33 = vld [vmem:[%s0 + $0x50] sm:$0xff]
    %v34 = vld [vmem:[%s0 + $0x58] sm:$0xff]
    %v35 = vld [vmem:[%s0 + $0x60] sm:$0xff]
    %v36 = vld [vmem:[%s0 + $0x68] sm:$0xff]
    %v37 = vld [vmem:[%s0 + $0x70] sm:$0xff]
    %v38 = vld [vmem:[%s0 + $0x78] sm:$0xff]
    %v39 = vpack.c.bf16 %v24, %v23
    %v40 = vpack.c.bf16 %v26, %v25
    %v41 = vpack.c.bf16 %v28, %v27
    %v42 = vpack.c.bf16 %v30, %v29
    %v43 = vpack.c.bf16 %v32, %v31
    %v44 = vpack.c.bf16 %v34, %v33
    %v45 = vpack.c.bf16 %v36, %v35
    %v46 = vpack.c.bf16 %v38, %v37
    %v47 = vld [vmem:[%s1] sm:$0xf]
    %v48 = vld [vmem:[%s1 + $0x4] sm:$0xf]
    %v49 = vld [vmem:[%s1 + $0x8] sm:$0xf]
    %v50 = vld [vmem:[%s1 + $0xc] sm:$0xf]
    %v51 = vld [vmem:[%s2] sm:$0x1]
    %v53 = vlaneseq
    %v54 = vshrl.u32 %v53, 7
    %v55 = vsub.s32 0, %v54
    %v56 = vrot.slane %v51, %v55
    %v62 = vunpack.c.l.b16 %v47
    %v63 = vunpack.c.l.b16 %v48
    %v64 = vunpack.c.l.b16 %v49
    %v65 = vunpack.c.l.b16 %v50
    %v66 = vpack.c.b16 %v63, %v62
    %v67 = vpack.c.b16 %v65, %v64
    %vm70 = vcmask 261120
    %v72 = vsel %vm70, %v39, 0
    %v75 = vsel %vm70, %v40, 0
    %v78 = vsel %vm70, %v41, 0
    %v81 = vsel %vm70, %v42, 0
    %v84 = vsel %vm70, %v43, 0
    %v87 = vsel %vm70, %v44, 0
    %v90 = vsel %vm70, %v45, 0
    %v93 = vsel %vm70, %v46, 0
    %95 = vmatprep.subr.bf16.mxu0 0
    %96 = vmatpush1.bf16.msra.mxu0 0
    %97 = vmatprep.subr.bf16.mxu0 0
    %98 = vmatpush1.bf16.msra.mxu0 0
    %99 = vmatprep.subr.bf16.mxu0 0
    %100 = vmatpush1.bf16.msra.mxu0 0
    %101 = vmatprep.subr.bf16.mxu0 0
    %102 = vmatpush1.bf16.msra.mxu0 0
    %103 = vmatprep.subr.bf16.mxu0 0
    %104 = vmatpush1.bf16.msra.mxu0 0
    %105 = vmatprep.subr.bf16.mxu0 0
    %106 = vmatpush1.bf16.msra.mxu0 0
    %107 = vmatprep.subr.bf16.mxu0 0
    %108 = vmatpush1.bf16.msra.mxu0 %v67
    %109 = vmatprep.subr.bf16.mxu0 0
    %110 = vmatpush1.bf16.msra.mxu0 %v66
    %111 = vmatprep.subr.bf16.mxu0 0
    %112 = vmatpush2.bf16.msra.mxu0 0
    %113 = vmatprep.subr.bf16.mxu0 0
    %114 = vmatpush2.bf16.msra.mxu0 0
    %115 = vmatprep.subr.bf16.mxu0 0
    %116 = vmatpush2.bf16.msra.mxu0 0
    %117 = vmatprep.subr.bf16.mxu0 0
    %118 = vmatpush2.bf16.msra.mxu0 0
    %119 = vmatprep.subr.bf16.mxu0 0
    %120 = vmatpush2.bf16.msra.mxu0 0
    %121 = vmatprep.subr.bf16.mxu0 0
    %122 = vmatpush2.bf16.msra.mxu0 0
    %123 = vmatprep.subr.bf16.mxu0 0
    %124 = vmatpush2.bf16.msra.mxu0 0
    %125 = vmatprep.subr.bf16.mxu0 0
    %126 = vmatpush2.bf16.msra.mxu0 0
    %127 = vmatprep.mubr.bf16.mxu0 0
    %128 = vmatmul.mubr.bf16.gmra.mxu0 %v72
    %v129 = vpop.f32.mrf.mxu0
    %v130 = vadd.f32 %v56, %v129
    %v131 = vpop.f32.mrf.mxu0
    %v132 = vpop.f32.mrf.mxu0
    %v133 = vadd.f32 %v56, %v132
    %v134 = vpop.f32.mrf.mxu0
    %135 = vmatprep.mubr.bf16.mxu0 0
    %136 = vmatmul.mubr.bf16.gmra.mxu0 %v75
    %v137 = vpop.f32.mrf.mxu0
    %v138 = vadd.f32 %v56, %v137
    %v139 = vpop.f32.mrf.mxu0
    %v140 = vpop.f32.mrf.mxu0
    %v141 = vadd.f32 %v56, %v140
    %v142 = vpop.f32.mrf.mxu0
    %143 = vmatprep.mubr.bf16.mxu0 0
    %144 = vmatmul.mubr.bf16.gmra.mxu0 %v78
    %v145 = vpop.f32.mrf.mxu0
    %v146 = vadd.f32 %v56, %v145
    %v147 = vpop.f32.mrf.mxu0
    %v148 = vpop.f32.mrf.mxu0
    %v149 = vadd.f32 %v56, %v148
    %v150 = vpop.f32.mrf.mxu0
    %151 = vmatprep.mubr.bf16.mxu0 0
    %152 = vmatmul.mubr.bf16.gmra.mxu0 %v81
    %v153 = vpop.f32.mrf.mxu0
    %v154 = vadd.f32 %v56, %v153
    %v155 = vpop.f32.mrf.mxu0
    %v156 = vpop.f32.mrf.mxu0
    %v157 = vadd.f32 %v56, %v156
    %v158 = vpop.f32.mrf.mxu0
    %159 = vmatprep.mubr.bf16.mxu0 0
    %160 = vmatmul.mubr.bf16.gmra.mxu0 %v84
    %v161 = vpop.f32.mrf.mxu0
    %v162 = vadd.f32 %v56, %v161
    %v163 = vpop.f32.mrf.mxu0
    %v164 = vpop.f32.mrf.mxu0
    %v165 = vadd.f32 %v56, %v164
    %v166 = vpop.f32.mrf.mxu0
    %167 = vmatprep.mubr.bf16.mxu0 0
    %168 = vmatmul.mubr.bf16.gmra.mxu0 %v87
    %v169 = vpop.f32.mrf.mxu0
    %v170 = vadd.f32 %v56, %v169
    %v171 = vpop.f32.mrf.mxu0
    %v172 = vpop.f32.mrf.mxu0
    %v173 = vadd.f32 %v56, %v172
    %v174 = vpop.f32.mrf.mxu0
    %175 = vmatprep.mubr.bf16.mxu0 0
    %176 = vmatmul.mubr.bf16.gmra.mxu0 %v90
    %v177 = vpop.f32.mrf.mxu0
    %v178 = vadd.f32 %v56, %v177
    %v179 = vpop.f32.mrf.mxu0
    %v180 = vpop.f32.mrf.mxu0
    %v181 = vadd.f32 %v56, %v180
    %v182 = vpop.f32.mrf.mxu0
    %183 = vmatprep.mubr.bf16.mxu0 0
    %184 = vmatmul.mubr.bf16.gmra.mxu0 %v93
    %v185 = vpop.f32.mrf.mxu0
    %v186 = vadd.f32 %v56, %v185
    %v187 = vpop.f32.mrf.mxu0
    %v188 = vpop.f32.mrf.mxu0
    %v189 = vadd.f32 %v56, %v188
    %v190 = vpop.f32.mrf.mxu0
    %191 = vdwg.mxu0
    %v192 = vmax.f32 %v130, 0.0
    %v193 = vmax.f32 %v133, 0.0
    %v194 = vmax.f32 %v138, 0.0
    %v195 = vmax.f32 %v141, 0.0
    %v196 = vmax.f32 %v146, 0.0
    %v197 = vmax.f32 %v149, 0.0
    %v198 = vmax.f32 %v154, 0.0
    %v199 = vmax.f32 %v157, 0.0
    %v200 = vmax.f32 %v162, 0.0
    %v201 = vmax.f32 %v165, 0.0
    %v202 = vmax.f32 %v170, 0.0
    %v203 = vmax.f32 %v173, 0.0
    %v204 = vmax.f32 %v178, 0.0
    %v205 = vmax.f32 %v181, 0.0
    %v206 = vmax.f32 %v186, 0.0
    %v207 = vmax.f32 %v189, 0.0
    %v208 = vld [vmem:[%s3] sm:$0x1]
    %v210 = vlaneseq
    %v211 = vshrl.u32 %v210, 7
    %v212 = vsub.s32 0, %v211
    %v213 = vrot.slane %v208, %v212
    %v215 = vmul.f32 %v192, %v213
    %v216 = vmul.f32 %v193, %v213
    %v217 = vmul.f32 %v194, %v213
    %v218 = vmul.f32 %v195, %v213
    %v219 = vmul.f32 %v196, %v213
    %v220 = vmul.f32 %v197, %v213
    %v221 = vmul.f32 %v198, %v213
    %v222 = vmul.f32 %v199, %v213
    %v223 = vmul.f32 %v200, %v213
    %v224 = vmul.f32 %v201, %v213
    %v225 = vmul.f32 %v202, %v213
    %v226 = vmul.f32 %v203, %v213
    %v227 = vmul.f32 %v204, %v213
    %v228 = vmul.f32 %v205, %v213
    %v229 = vmul.f32 %v206, %v213
    %v230 = vmul.f32 %v207, %v213
    %vm231 = vcmask 523264
    %v232 = vsel %vm231, %v215, 0.0
    %233 = vadd.xlane.f32.xlu0 %v232
    %v234 = vpop.xlane.xlu0 %233
    %v235 = vsel %vm231, %v216, 0.0
    %236 = vadd.xlane.f32.xlu0 %v235
    %v237 = vpop.xlane.xlu0 %236
    %v238 = vsel %vm231, %v217, 0.0
    %239 = vadd.xlane.f32.xlu0 %v238
    %v240 = vpop.xlane.xlu0 %239
    %v241 = vsel %vm231, %v218, 0.0
    %242 = vadd.xlane.f32.xlu0 %v241
    %v243 = vpop.xlane.xlu0 %242
    %v244 = vsel %vm231, %v219, 0.0
    %245 = vadd.xlane.f32.xlu0 %v244
    %v246 = vpop.xlane.xlu0 %245
    %v247 = vsel %vm231, %v220, 0.0
    %248 = vadd.xlane.f32.xlu0 %v247
    %v249 = vpop.xlane.xlu0 %248
    %v250 = vsel %vm231, %v221, 0.0
    %251 = vadd.xlane.f32.xlu0 %v250
    %v252 = vpop.xlane.xlu0 %251
    %v253 = vsel %vm231, %v222, 0.0
    %254 = vadd.xlane.f32.xlu0 %v253
    %v255 = vpop.xlane.xlu0 %254
    %v256 = vsel %vm231, %v223, 0.0
    %257 = vadd.xlane.f32.xlu0 %v256
    %v258 = vpop.xlane.xlu0 %257
    %v259 = vsel %vm231, %v224, 0.0
    %260 = vadd.xlane.f32.xlu0 %v259
    %v261 = vpop.xlane.xlu0 %260
    %v262 = vsel %vm231, %v225, 0.0
    %263 = vadd.xlane.f32.xlu0 %v262
    %v264 = vpop.xlane.xlu0 %263
    %v265 = vsel %vm231, %v226, 0.0
    %266 = vadd.xlane.f32.xlu0 %v265
    %v267 = vpop.xlane.xlu0 %266
    %v268 = vsel %vm231, %v227, 0.0
    %269 = vadd.xlane.f32.xlu0 %v268
    %v270 = vpop.xlane.xlu0 %269
    %v271 = vsel %vm231, %v228, 0.0
    %272 = vadd.xlane.f32.xlu0 %v271
    %v273 = vpop.xlane.xlu0 %272
    %v274 = vsel %vm231, %v229, 0.0
    %275 = vadd.xlane.f32.xlu0 %v274
    %v276 = vpop.xlane.xlu0 %275
    %v277 = vsel %vm231, %v230, 0.0
    %278 = vadd.xlane.f32.xlu0 %v277
    %v279 = vpop.xlane.xlu0 %278
    %s280 = sld [smem:[#allocation2]]
    %v281 = vstv %s280
    %v282 = vadd.f32 %v234, %v281
    %v283 = vadd.f32 %v237, %v281
    %v284 = vadd.f32 %v240, %v281
    %v285 = vadd.f32 %v243, %v281
    %v286 = vadd.f32 %v246, %v281
    %v287 = vadd.f32 %v249, %v281
    %v288 = vadd.f32 %v252, %v281
    %v289 = vadd.f32 %v255, %v281
    %v290 = vadd.f32 %v258, %v281
    %v291 = vadd.f32 %v261, %v281
    %v292 = vadd.f32 %v264, %v281
    %v293 = vadd.f32 %v267, %v281
    %v294 = vadd.f32 %v270, %v281
    %v295 = vadd.f32 %v273, %v281
    %v296 = vadd.f32 %v276, %v281
    %v297 = vadd.f32 %v279, %v281
    %v314 = vlaneseq
    %v315 = vand.u32 %v314, 127
    %v316 = vlaneseq
    %v317 = vshrl.u32 %v316, 7
    %v318 = vsub.s32 %v315, %v317
    %v319 = vrot.slane %v282, %v318
    %v320 = vadd.s32 %v315, 4294967288
    %v321 = vlaneseq
    %v322 = vshrl.u32 %v321, 7
    %v323 = vsub.s32 %v320, %v322
    %v324 = vrot.slane %v283, %v323
    %vm325 = vcmask 130112
    %v326 = vsel %vm325, %v324, %v319
    %v327 = vadd.s32 %v315, 4294967280
    %v328 = vlaneseq
    %v329 = vshrl.u32 %v328, 7
    %v330 = vsub.s32 %v327, %v329
    %v331 = vrot.slane %v284, %v330
    %vm332 = vcmask 195712
    %v333 = vsel %vm332, %v331, %v326
    %v334 = vadd.s32 %v315, 4294967272
    %v335 = vlaneseq
    %v336 = vshrl.u32 %v335, 7
    %v337 = vsub.s32 %v334, %v336
    %v338 = vrot.slane %v285, %v337
    %vm339 = vcmask 261312
    %v340 = vsel %vm339, %v338, %v333
    %v341 = vadd.s32 %v315, 4294967264
    %v342 = vlaneseq
    %v343 = vshrl.u32 %v342, 7
    %v344 = vsub.s32 %v341, %v343
    %v345 = vrot.slane %v286, %v344
    %vm346 = vcmask 326912
    %v347 = vsel %vm346, %v345, %v340
    %v348 = vadd.s32 %v315, 4294967256
    %v349 = vlaneseq
    %v350 = vshrl.u32 %v349, 7
    %v351 = vsub.s32 %v348, %v350
    %v352 = vrot.slane %v287, %v351
    %vm353 = vcmask 392512
    %v354 = vsel %vm353, %v352, %v347
    %v355 = vadd.s32 %v315, 4294967248
    %v356 = vlaneseq
    %v357 = vshrl.u32 %v356, 7
    %v358 = vsub.s32 %v355, %v357
    %v359 = vrot.slane %v288, %v358
    %vm360 = vcmask 458112
    %v361 = vsel %vm360, %v359, %v354
    %v362 = vadd.s32 %v315, 4294967240
    %v363 = vlaneseq
    %v364 = vshrl.u32 %v363, 7
    %v365 = vsub.s32 %v362, %v364
    %v366 = vrot.slane %v289, %v365
    %vm367 = vcmask 523712
    %v368 = vsel %vm367, %v366, %v361
    %v369 = vadd.s32 %v315, 4294967232
    %v370 = vlaneseq
    %v371 = vshrl.u32 %v370, 7
    %v372 = vsub.s32 %v369, %v371
    %v373 = vrot.slane %v290, %v372
    %vm374 = vcmask 589312
    %v375 = vsel %vm374, %v373, %v368
    %v376 = vadd.s32 %v315, 4294967224
    %v377 = vlaneseq
    %v378 = vshrl.u32 %v377, 7
    %v379 = vsub.s32 %v376, %v378
    %v380 = vrot.slane %v291, %v379
    %vm381 = vcmask 654912
    %v382 = vsel %vm381, %v380, %v375
    %v383 = vadd.s32 %v315, 4294967216
    %v384 = vlaneseq
    %v385 = vshrl.u32 %v384, 7
    %v386 = vsub.s32 %v383, %v385
    %v387 = vrot.slane %v292, %v386
    %vm388 = vcmask 720512
    %v389 = vsel %vm388, %v387, %v382
    %v390 = vadd.s32 %v315, 4294967208
    %v391 = vlaneseq
    %v392 = vshrl.u32 %v391, 7
    %v393 = vsub.s32 %v390, %v392
    %v394 = vrot.slane %v293, %v393
    %vm395 = vcmask 786112
    %v396 = vsel %vm395, %v394, %v389
    %v397 = vadd.s32 %v315, 4294967200
    %v398 = vlaneseq
    %v399 = vshrl.u32 %v398, 7
    %v400 = vsub.s32 %v397, %v399
    %v401 = vrot.slane %v294, %v400
    %vm402 = vcmask 851712
    %v403 = vsel %vm402, %v401, %v396
    %v404 = vadd.s32 %v315, 4294967192
    %v405 = vlaneseq
    %v406 = vshrl.u32 %v405, 7
    %v407 = vsub.s32 %v404, %v406
    %v408 = vrot.slane %v295, %v407
    %vm409 = vcmask 917312
    %v410 = vsel %vm409, %v408, %v403
    %v411 = vadd.s32 %v315, 4294967184
    %v412 = vlaneseq
    %v413 = vshrl.u32 %v412, 7
    %v414 = vsub.s32 %v411, %v413
    %v415 = vrot.slane %v296, %v414
    %vm416 = vcmask 982912
    %v417 = vsel %vm416, %v415, %v410
    %v418 = vadd.s32 %v315, 4294967176
    %v419 = vlaneseq
    %v420 = vshrl.u32 %v419, 7
    %v421 = vsub.s32 %v418, %v420
    %v422 = vrot.slane %v297, %v421
    %vm423 = vcmask 1048512
    %v424 = vsel %vm423, %v422, %v417
    %426 = vst [vmem:[#allocation3] sm:$0x1] %v424
    // Predicated region
    $region22: #{tpu_custom_call.1} parent=1 // pred_check
      _
    $region23: #{tpu_custom_call.1} parent=1 // pred_check_branch
      %428 = sbr.rel (0) target = $region25
    $region24: #{tpu_custom_call.1} parent=1 // pred_region
      %s430 = ssub.s32 16, 16
      %431 = vsyncadd [#allocation4], %s430
      %s433 = sshll.u32 [#allocation3], 4
      %s434 = int_to_ptr.vmem [resolvable:$true] %s433
      %436 = dma.vmem_to_hbm [thread:$0]  %s434, 16, %s5, [#allocation4]
    $region25: #{tpu_custom_call.1} parent=1 // pred_fallthru
      _
    // Predicated region
    $region26: #{tpu_custom_call.1} parent=1 // pred_check
      _
    $region27: #{tpu_custom_call.1} parent=1 // pred_check_branch
      %438 = sbr.rel (0) target = $region29
    $region28: #{tpu_custom_call.1} parent=1 // pred_region
      %439 = dma.done [#allocation4], 16
    $region29: #{tpu_custom_call.1} parent=1 // pred_fallthru
      _
    %440 = vsyncpa [#allocation4], 1

</llo_original>
